<compile_context>
chip_gen: v7x
topology: tpu7x:2x2x1
jax: 0.10.0
libtpu: 0.0.40
codegen_flags: <defaults>
</compile_context>

<pallas_src>
import functools
import zlib

import jax
import jax.numpy as jnp
from jax import lax
from jax.experimental import pallas as pl
from jax.experimental.pallas import tpu as pltpu

_LANE = 128                      # TPU lane width (last-dim vreg width)
_MAX_BLOCK_ROWS = 1024           # 128-lane output rows per grid step (amortizes ~0.35us/step)
_VMEM_BUDGET = 40 * 1024 * 1024  # conservative working-set budget (v7x: 64 MiB / TC)
_PAD_ID = -(2 ** 30)             # padding sentinel: id + p*card never lands in [0, K)


def _round_up(x: int, m: int) -> int:
    return ((x + m - 1) // m) * m


def _cdiv(a: int, b: int) -> int:
    return -(-a // b)


def _vmem_estimate_bytes(block_rows: int, lane: int, k_rows: int) -> int:
    """Rough per-step VMEM working set for the one-hot-matmul gather."""
    table = 2 * k_rows * lane * 2              # bf16 hi + lo tables, single VMEM copy each
    ids = 2 * block_rows * _LANE * 4           # int32 ids block, double-buffered, lane-padded
    out = 2 * block_rows * lane * 4            # f32 output block, double-buffered
    sel = block_rows * k_rows * (4 + 4 + 2)    # iota + compare mask + bf16 sel temporaries
    acc = 2 * block_rows * lane * 4            # two f32 matmul results
    return table + ids + out + sel + acc


def _embed_onehot_kernel(ids_ref, hi_ref, lo_ref, out_ref, *, per_row, card):
    """Gather block_rows * per_row embeddings with two bf16 MXU matmuls.

    ids_ref : VMEM int32[block_rows, per_row]; raw token ids, _PAD_ID for padding.
    hi_ref  : VMEM bf16[per_row * card, lane]; block-diagonal packed table (hi bits).
    lo_ref  : VMEM bf16[per_row * card, lane]; f32 residual (table - hi).
    out_ref : VMEM f32[block_rows, lane]; token (r, p) lands at lanes [p*D, (p+1)*D).
    """
    rows = ids_ref.shape[0]
    k = hi_ref.shape[0]
    ids = ids_ref[...]
    col = lax.broadcasted_iota(jnp.int32, (rows, k), 1)
    # Multi-hot selection: the token packed at position p selects packed-table
    # row id + p*card.  Boolean OR-accumulate, one final cast to bf16 (cuts the
    # per-p convert+add VPU passes of the old f32 build).  Padding ids
    # (_PAD_ID) never match any column, contributing an all-zero row.
    hit = col == ids[:, 0:1]
    for p in range(1, per_row):  # static, tiny loop (per_row = 128 // output_dim)
        hit = jnp.logical_or(hit, col == (ids[:, p:p + 1] + p * card))
    sel = hit.astype(jnp.bfloat16)
    # sel is exactly {0,1} in bf16, so two native bf16 passes with f32
    # accumulation recover the f32 table rows to ~2^-18 relative error
    # (vs ~6 MXU passes for an f32 x f32 HIGHEST matmul).
    acc = jnp.dot(sel, hi_ref[...], preferred_element_type=jnp.float32)
    acc = acc + jnp.dot(sel, lo_ref[...], preferred_element_type=jnp.float32)
    out_ref[...] = acc.astype(out_ref.dtype)


@functools.partial(jax.jit, static_argnames=("per_row", "vocab_card", "out_dim"))
def embedding_lookup_pallas(token_ids, table_hi, table_lo, *, per_row, vocab_card, out_dim):
    """token_ids int32[N] -> f32[N, out_dim]."""
    n = token_ids.shape[0]
    k_rows, lane = table_hi.shape

    rows_total = max(1, _cdiv(n, per_row))
    block_rows = min(_MAX_BLOCK_ROWS, _round_up(rows_total, 8))
    # v7x megacore: keep >= 2 parallel grid steps when there is enough work to
    # split (neutral on single-TC v5e/v6e).
    if rows_total >= 16:
        block_rows = min(block_rows, _round_up(_cdiv(rows_total, 2), 8))
    # Cap block_rows so the per-step working set (sel/iota temps scale with
    # block_rows * K) stays within a budget that fits v7x's 64 MiB VMEM.
    while block_rows > 8 and _vmem_estimate_bytes(block_rows, lane, k_rows) > _VMEM_BUDGET:
        block_rows = max(8, _round_up(block_rows // 2, 8))
    rows_pad = _round_up(rows_total, block_rows)
    n_pad = rows_pad * per_row

    vmem_limit = int(min(
        64 * 1024 * 1024,
        max(16 * 1024 * 1024,
            (_vmem_estimate_bytes(block_rows, lane, k_rows) * 3) // 2)))

    # Pad with a sentinel that can never match a packed row; tail sliced off.
    ids = jnp.full((n_pad,), _PAD_ID, dtype=jnp.int32).at[:n].set(
        token_ids.astype(jnp.int32))
    ids2d = ids.reshape(rows_pad, per_row)

    kernel = functools.partial(_embed_onehot_kernel, per_row=per_row, card=vocab_card)
    out = pl.pallas_call(
        kernel,
        out_shape=jax.ShapeDtypeStruct((rows_pad, lane), jnp.float32),
        grid_spec=pltpu.PrefetchScalarGridSpec(
            num_scalar_prefetch=0,
            grid=(rows_pad // block_rows,),
            in_specs=[
                pl.BlockSpec((block_rows, per_row), lambda i: (i, 0)),
                # Small packed tables: whole-array VMEM residents -> single
                # copy, no per-step re-fetch, no double buffer.
                pl.BlockSpec(memory_space=pltpu.MemorySpace.VMEM),
                pl.BlockSpec(memory_space=pltpu.MemorySpace.VMEM),
            ],
            out_specs=pl.BlockSpec((block_rows, lane), lambda i: (i, 0)),
        ),
        compiler_params=pltpu.CompilerParams(
            # Blocks are independent (no cross-step accumulation) -> shard
            # across TensorCores on v7x; neutral on v5e/v6e.
            dimension_semantics=("parallel",),
            vmem_limit_bytes=vmem_limit,
        ),
    )(ids2d, table_hi, table_lo)

    # Unpack lane-dense rows back to (N, D): pure layout plumbing in the wrapper.
    if per_row == 1:
        return out[:n, :out_dim]
    return out.reshape(n_pad, out_dim)[:n]


class EncoderEmbeddingLayerJAX:
    """JAX/Pallas port of ekdosi EncoderEmbeddingLayer."""

    def __init__(self, vocab, num_oov_buckets=1, lookups_per_sample=1,
                 output_dimension=64, random_mask=None, seed=0):
        self.word2idx = {w: i for i, w in enumerate(vocab)}
        self.num_oov_buckets = num_oov_buckets
        self.output_dim = output_dimension
        self.lookup_cardinality = len(vocab) + num_oov_buckets
        self.lookups_per_sample = lookups_per_sample
        if random_mask is not None:
            # random_mask substitutes index (cardinality - 1), i.e. the single
            # OOV-bucket row; only valid because num_oov_buckets == 1.
            assert num_oov_buckets == 1
            assert 0.0 <= random_mask <= 1.0
        self.random_mask = random_mask

        # nn.Embedding default init: N(0, 1) — deterministic here.
        key = jax.random.PRNGKey(seed)
        self.embedding_table = jax.random.normal(
            key, (self.lookup_cardinality, self.output_dim), dtype=jnp.float32)

        # Lane-dense packing: place `per_row` tokens side by side along the
        # 128-lane axis so the kernel writes full-width tiles.  If output_dim
        # does not divide 128, pad the lane dim up to a multiple of 128 so the
        # output stores stay unmasked; padding is sliced off in the wrapper.
        d = self.output_dim
        if d < _LANE and _LANE % d == 0:
            self._per_row = _LANE // d
            self._lane = _LANE
        else:
            self._per_row = 1
            self._lane = _round_up(d, _LANE)

        card = self.lookup_cardinality
        packed = jnp.zeros((self._per_row * card, self._lane), jnp.float32)
        for p in range(self._per_row):
            packed = packed.at[p * card:(p + 1) * card, p * d:(p + 1) * d].set(
                self.embedding_table)
        # Exact-ish 2-pass split: bf16 hi + bf16 residual.  With a {0,1}
        # selection matrix, sel@hi + sel@lo (f32 accumulation) reproduces each
        # f32 row to ~2^-18 relative error using only native bf16 MXU passes,
        # and the VMEM table footprint is the same as one f32 copy.
        self._table_hi = packed.astype(jnp.bfloat16)
        self._table_lo = (packed - self._table_hi.astype(jnp.float32)).astype(jnp.bfloat16)

    def _encode(self, word):
        idx = self.word2idx.get(word)
        if idx is None:
            # Unseen words hash into one of the reserved OOV-bucket rows.
            # (The PyTorch reference would raise KeyError here even though the
            # table allocates these rows.)
            idx = len(self.word2idx) + (
                zlib.crc32(word.encode("utf-8")) % self.num_oov_buckets)
        return idx

    def forward(self, text_input, return_lookup=False, training=False, rng_key=None):
        x = jnp.asarray([self._encode(w) for w in text_input], dtype=jnp.int32)
        if training and self.random_mask is not None:
            if rng_key is None:
                rng_key = jax.random.PRNGKey(0)
            mask = jax.random.uniform(rng_key, x.shape) < self.random_mask
            x = jnp.where(mask, jnp.int32(self.lookup_cardinality - 1), x)
        if return_lookup:
            return x
        y = embedding_lookup_pallas(
            x, self._table_hi, self._table_lo,
            per_row=self._per_row, vocab_card=self.lookup_cardinality,
            out_dim=self.output_dim)
        # nn.Flatten() on (N, D) keeps (N, D) — identity reshape.
        return y.reshape(y.shape[0], -1)


if __name__ == "__main__":
    # Test 1: vocab=16, 1 OOV bucket -> cardinality 17, output_dim=32
    # (4 tokens packed per 128-lane row), seq=8 tokens.
    vocab = [f"word{i}" for i in range(16)]
    layer = EncoderEmbeddingLayerJAX(
        vocab, num_oov_buckets=1, output_dimension=32, seed=0)

    key = jax.random.PRNGKey(0)
    idx = jax.random.randint(key, (8,), 0, len(vocab))
    text_input = [vocab[int(i)] for i in idx]

    out = layer.forward(text_input)
    out = jax.block_until_ready(out)

    ref = jnp.take(
        layer.embedding_table,
        jnp.asarray([layer.word2idx[w] for w in text_input], jnp.int32),
        axis=0)
    assert out.shape == (8, 32), out.shape
    assert jnp.allclose(out, ref, rtol=1e-4, atol=1e-5), \
        "Pallas embedding gather mismatch (packed path)"

    # return_lookup path parity.
    lookup = layer.forward(text_input, return_lookup=True)
    assert lookup.shape == (8,)

    # Test 2: output_dim=72 does not divide 128 -> per_row=1 fallback with the
    # lane dimension zero-padded to 128 (lane-dense stores), seq=5 tokens.
    layer2 = EncoderEmbeddingLayerJAX(
        vocab, num_oov_buckets=1, output_dimension=72, seed=0)
    idx2 = jax.random.randint(jax.random.PRNGKey(1), (5,), 0, len(vocab))
    text_input2 = [vocab[int(i)] for i in idx2]
    out2 = jax.block_until_ready(layer2.forward(text_input2))
    ref2 = jnp.take(
        layer2.embedding_table,
        jnp.asarray([layer2.word2idx[w] for w in text_input2], jnp.int32),
        axis=0)
    assert out2.shape == (5, 72), out2.shape
    assert jnp.allclose(out2, ref2, rtol=1e-4, atol=1e-5), \
        "Pallas embedding gather mismatch (lane-padded path)"

    print("KERNEL_OK")
</pallas_src>

<mosaic_0001>
module attributes {stable_mosaic.version = 11 : i64} {
  func.func @_embed_onehot_kernel(%arg0: i32, %arg1: memref<8x4xi32, #tpu.memory_space<vmem>>, %arg2: memref<68x128xbf16, #tpu.memory_space<vmem>>, %arg3: memref<68x128xbf16, #tpu.memory_space<vmem>>, %arg4: memref<8x128xf32, #tpu.memory_space<vmem>>) attributes {dimension_semantics = [#tpu.dimension_semantics<parallel>], iteration_bounds = array<i64: 1>, scalar_prefetch = 0 : i64, scratch_operands = 0 : i64, tpu.core_type = #tpu.core_type<tc>, window_params = [{transform_indices = @transform_0, window_bounds = array<i64: 8, 4>}, {pipeline_mode = #tpu.pipeline_mode<synchronous>, transform_indices = @transform_1, window_bounds = array<i64: 68, 128>}, {pipeline_mode = #tpu.pipeline_mode<synchronous>, transform_indices = @transform_2, window_bounds = array<i64: 68, 128>}, {transform_indices = @transform_3, window_bounds = array<i64: 8, 128>}]} {
    %c0 = arith.constant 0 : index
    %c0_0 = arith.constant 0 : index
    %0 = vector.load %arg1[%c0, %c0_0] : memref<8x4xi32, #tpu.memory_space<vmem>>, vector<8x4xi32>
    %1 = tpu.iota {dimensions = array<i32: 1>} : vector<8x68xi32>
    %2 = vector.extract_strided_slice %0 {offsets = [0, 0], sizes = [8, 1], strides = [1, 1]} : vector<8x4xi32> to vector<8x1xi32>
    %3 = vector.broadcast %2 : vector<8x1xi32> to vector<8x68xi32>
    %4 = arith.cmpi eq, %1, %3 : vector<8x68xi32>
    %5 = vector.extract_strided_slice %0 {offsets = [0, 1], sizes = [8, 1], strides = [1, 1]} : vector<8x4xi32> to vector<8x1xi32>
    %c17_i32 = arith.constant 17 : i32
    %6 = vector.broadcast %c17_i32 : i32 to vector<8x1xi32>
    %7 = arith.addi %5, %6 : vector<8x1xi32>
    %8 = vector.broadcast %7 : vector<8x1xi32> to vector<8x68xi32>
    %9 = arith.cmpi eq, %1, %8 : vector<8x68xi32>
    %10 = arith.ori %4, %9 : vector<8x68xi1>
    %11 = vector.extract_strided_slice %0 {offsets = [0, 2], sizes = [8, 1], strides = [1, 1]} : vector<8x4xi32> to vector<8x1xi32>
    %c34_i32 = arith.constant 34 : i32
    %12 = vector.broadcast %c34_i32 : i32 to vector<8x1xi32>
    %13 = arith.addi %11, %12 : vector<8x1xi32>
    %14 = vector.broadcast %13 : vector<8x1xi32> to vector<8x68xi32>
    %15 = arith.cmpi eq, %1, %14 : vector<8x68xi32>
    %16 = arith.ori %10, %15 : vector<8x68xi1>
    %17 = vector.extract_strided_slice %0 {offsets = [0, 3], sizes = [8, 1], strides = [1, 1]} : vector<8x4xi32> to vector<8x1xi32>
    %c51_i32 = arith.constant 51 : i32
    %18 = vector.broadcast %c51_i32 : i32 to vector<8x1xi32>
    %19 = arith.addi %17, %18 : vector<8x1xi32>
    %20 = vector.broadcast %19 : vector<8x1xi32> to vector<8x68xi32>
    %21 = arith.cmpi eq, %1, %20 : vector<8x68xi32>
    %22 = arith.ori %16, %21 : vector<8x68xi1>
    %23 = arith.extui %22 : vector<8x68xi1> to vector<8x68xi32>
    %24 = arith.sitofp %23 : vector<8x68xi32> to vector<8x68xf32>
    %25 = arith.truncf %24 : vector<8x68xf32> to vector<8x68xbf16>
    %c0_1 = arith.constant 0 : index
    %c0_2 = arith.constant 0 : index
    %26 = vector.load %arg2[%c0_1, %c0_2] : memref<68x128xbf16, #tpu.memory_space<vmem>>, vector<68x128xbf16>
    %cst = arith.constant dense<0.000000e+00> : vector<8x128xf32>
    %27 = tpu.matmul %25, %26, %cst {dimension_numbers = #tpu.dot_dimension_numbers<[1], [0], [0], [1], [0, 0, 1, 1], [], []>} : vector<8x68xbf16>, vector<68x128xbf16>, vector<8x128xf32> -> vector<8x128xf32>
    %c0_3 = arith.constant 0 : index
    %c0_4 = arith.constant 0 : index
    %28 = vector.load %arg3[%c0_3, %c0_4] : memref<68x128xbf16, #tpu.memory_space<vmem>>, vector<68x128xbf16>
    %cst_5 = arith.constant dense<0.000000e+00> : vector<8x128xf32>
    %29 = tpu.matmul %25, %28, %cst_5 {dimension_numbers = #tpu.dot_dimension_numbers<[1], [0], [0], [1], [0, 0, 1, 1], [], []>} : vector<8x68xbf16>, vector<68x128xbf16>, vector<8x128xf32> -> vector<8x128xf32>
    %30 = arith.addf %27, %29 : vector<8x128xf32>
    %c0_6 = arith.constant 0 : index
    %c0_7 = arith.constant 0 : index
    %31 = vector.load %arg4[%c0_6, %c0_7] : memref<8x128xf32, #tpu.memory_space<vmem>>, vector<8x128xf32>
    tpu.vector_store %arg4[%c0_6, %c0_7], %30 {strides = array<i32>} : memref<8x128xf32, #tpu.memory_space<vmem>>, vector<8x128xf32>,
    return
  }
  func.func @transform_0(%arg0: i32) -> (i32, i32) {
    %c0_i32 = arith.constant 0 : i32
    %c0_i32_0 = arith.constant 0 : i32
    return %arg0, %c0_i32 : i32, i32
  }
  func.func @transform_1(%arg0: i32) -> (i32, i32) {
    %c0_i32 = arith.constant 0 : i32
    %c0_i32_0 = arith.constant 0 : i32
    %c0_i32_1 = arith.constant 0 : i32
    return %c0_i32, %c0_i32_0 : i32, i32
  }
  func.func @transform_2(%arg0: i32) -> (i32, i32) {
    %c0_i32 = arith.constant 0 : i32
    %c0_i32_0 = arith.constant 0 : i32
    %c0_i32_1 = arith.constant 0 : i32
    return %c0_i32, %c0_i32_0 : i32, i32
  }
  func.func @transform_3(%arg0: i32) -> (i32, i32) {
    %c0_i32 = arith.constant 0 : i32
    %c0_i32_0 = arith.constant 0 : i32
    return %arg0, %c0_i32 : i32, i32
  }
}

</mosaic_0001>

<llo_original>
// kernel: embedding_lookup_pallas.1
$region0: #{embedding_lookup_pallas.1}
  #allocation0 [shape = 'u32[]', space=smem, size = 0x4, offset = 0x4, fixed_abs, tag = 'smem constant byte address 0x4 - core index']
  #allocation1 [shape = 'u32[144,128]{1,0:T(1,128)}', space=vmem, size = 0x12000, scoped, tag = 'internal scratch']
  %s0 = inlined_call_operand.vmem [shape: s32[8,4], index: 0, kind: input, shape index: {}]
  %s1 = inlined_call_operand.hbm [shape: bf16[68,128], index: 1, kind: input, shape index: {}]
  %s2 = inlined_call_operand.hbm [shape: bf16[68,128], index: 2, kind: input, shape index: {}]
  %s3 = inlined_call_operand.vmem [shape: f32[8,128], index: 3, kind: output, shape index: {}]
  %s4 = sld [smem:[#allocation0]]
  $region30: #{embedding_lookup_pallas.1} parent=0
    _
  %s6 = ssub.s32 1, %s4
  %s7 = scalar_select 0, %s6, %s4
  $region1: #{embedding_lookup_pallas.1} parent=0
    #allocation2 [shape = 'u8[18432]{0}', space=vmem, size = 0x4800, scoped, tag = 'input window, operand 1, single buffered']
    #allocation3 [shape = 's32[1]{0}', space=sflag, size = 0x4, scoped, tag = 'scoped memory for embedding_lookup_pallas.1']
    #allocation4 [shape = 'u8[18432]{0}', space=vmem, size = 0x4800, scoped, tag = 'input window, operand 2, single buffered']
    #allocation5 [shape = 's32[1]{0}', space=sflag, size = 0x4, scoped, tag = 'scoped memory for embedding_lookup_pallas.1']
    %8 = vsyncpa [#allocation3], 0
    %9 = vsyncpa [#allocation5], 0
    // Predicated region
    $region2: #{embedding_lookup_pallas.1} parent=1 // pred_check
      _
    $region3: #{embedding_lookup_pallas.1} parent=1 // pred_check_branch
      %11 = sbr.rel (0) target = $region5
    $region4: #{embedding_lookup_pallas.1} parent=1 // pred_region
      _
    $region5: #{embedding_lookup_pallas.1} parent=1 // pred_fallthru
      _
    // Predicated region
    $region6: #{embedding_lookup_pallas.1} parent=1 // pred_check
      _
    $region7: #{embedding_lookup_pallas.1} parent=1 // pred_check_branch
      %13 = sbr.rel (0) target = $region9
    $region8: #{embedding_lookup_pallas.1} parent=1 // pred_region
      %s15 = ssub.s32 576, 576
      %16 = vsyncadd [#allocation3], %s15
      %s17 = sshll.u32 [#allocation2], 4
      %s18 = int_to_ptr.vmem [resolvable:$true] %s17
      %23 = dma.hbm_to_vmem [thread:$0]  %s1, 576, %s18, [#allocation3], 64, 64, 4
    $region9: #{embedding_lookup_pallas.1} parent=1 // pred_fallthru
      _
    // Predicated region
    $region10: #{embedding_lookup_pallas.1} parent=1 // pred_check
      _
    $region11: #{embedding_lookup_pallas.1} parent=1 // pred_check_branch
      %25 = sbr.rel (0) target = $region13
    $region12: #{embedding_lookup_pallas.1} parent=1 // pred_region
      %s27 = ssub.s32 576, 576
      %28 = vsyncadd [#allocation5], %s27
      %s29 = sshll.u32 [#allocation4], 4
      %s30 = int_to_ptr.vmem [resolvable:$true] %s29
      %35 = dma.hbm_to_vmem [thread:$0]  %s2, 576, %s30, [#allocation5], 64, 64, 4
    $region13: #{embedding_lookup_pallas.1} parent=1 // pred_fallthru
      _
    // Predicated region
    $region14: #{embedding_lookup_pallas.1} parent=1 // pred_check
      _
    $region15: #{embedding_lookup_pallas.1} parent=1 // pred_check_branch
      %37 = sbr.rel (0) target = $region17
    $region16: #{embedding_lookup_pallas.1} parent=1 // pred_region
      %38 = dma.done [#allocation3], 576
    $region17: #{embedding_lookup_pallas.1} parent=1 // pred_fallthru
      _
    // Predicated region
    $region18: #{embedding_lookup_pallas.1} parent=1 // pred_check
      _
    $region19: #{embedding_lookup_pallas.1} parent=1 // pred_check_branch
      %40 = sbr.rel (0) target = $region21
    $region20: #{embedding_lookup_pallas.1} parent=1 // pred_region
      %41 = dma.done [#allocation5], 576
    $region21: #{embedding_lookup_pallas.1} parent=1 // pred_fallthru
      _
    %v43 = vld [vmem:[%s0] sm:$0xff]
    %v44 = vlaneseq
    %v45 = vand.u32 %v44, 127
    %46 = vset.pattern.permute.xlu0 0
    %47 = vperm.xlu0 %46, %v43
    %v48 = vpop.permute.xlu0 %47
    %vm49 = vcmp.eq.s32.totalorder %v45, %v48
    %v50 = vadd.s32 %v43, 17
    %51 = vset.pattern.permute.xlu0 1
    %52 = vperm.xlu0 %51, %v50
    %v53 = vpop.permute.xlu0 %52
    %vm54 = vcmp.eq.s32.totalorder %v45, %v53
    %vm55 = vmor %vm49, %vm54
    %v56 = vadd.s32 %v43, 34
    %57 = vset.pattern.permute.xlu0 2
    %58 = vperm.xlu0 %57, %v56
    %v59 = vpop.permute.xlu0 %58
    %vm60 = vcmp.eq.s32.totalorder %v45, %v59
    %vm61 = vmor %vm55, %vm60
    %v62 = vadd.s32 %v43, 51
    %63 = vset.pattern.permute.xlu0 3
    %64 = vperm.xlu0 %63, %v62
    %v65 = vpop.permute.xlu0 %64
    %vm66 = vcmp.eq.s32.totalorder %v45, %v65
    %vm67 = vmor %vm61, %vm66
    %v68 = vsel %vm67, 1, 0
    %v69 = vcvt.s32.f32 %v68
    %v70 = vpack.c.bf16 %v69, %v69
    %v71 = vld [vmem:[#allocation2] sm:$0xf]
    %v72 = vld [vmem:[#allocation2 + $0x4] sm:$0xf]
    %v73 = vld [vmem:[#allocation2 + $0x8] sm:$0xf]
    %v74 = vld [vmem:[#allocation2 + $0xc] sm:$0xf]
    %v75 = vld [vmem:[#allocation2 + $0x10] sm:$0xf]
    %v76 = vld [vmem:[#allocation2 + $0x14] sm:$0xf]
    %v77 = vld [vmem:[#allocation2 + $0x18] sm:$0xf]
    %v78 = vld [vmem:[#allocation2 + $0x1c] sm:$0xf]
    %v79 = vld [vmem:[#allocation2 + $0x20] sm:$0x3]
    %v80 = vld [vmem:[#allocation4] sm:$0xf]
    %v81 = vld [vmem:[#allocation4 + $0x4] sm:$0xf]
    %v82 = vld [vmem:[#allocation4 + $0x8] sm:$0xf]
    %v83 = vld [vmem:[#allocation4 + $0xc] sm:$0xf]
    %v84 = vld [vmem:[#allocation4 + $0x10] sm:$0xf]
    %v85 = vld [vmem:[#allocation4 + $0x14] sm:$0xf]
    %v86 = vld [vmem:[#allocation4 + $0x18] sm:$0xf]
    %v87 = vld [vmem:[#allocation4 + $0x1c] sm:$0xf]
    %v88 = vld [vmem:[#allocation4 + $0x20] sm:$0x3]
    %v98 = vunpack.c.l.b16 %v80
    %v99 = vunpack.c.l.b16 %v81
    %v100 = vunpack.c.l.b16 %v82
    %v101 = vunpack.c.l.b16 %v83
    %v102 = vunpack.c.l.b16 %v84
    %v103 = vunpack.c.l.b16 %v85
    %v104 = vunpack.c.l.b16 %v86
    %v105 = vunpack.c.l.b16 %v87
    %v106 = vunpack.c.l.b16 %v88
    %v107 = vpack.c.b16 %v99, %v98
    %v108 = vpack.c.b16 %v101, %v100
    %v109 = vpack.c.b16 %v103, %v102
    %v110 = vpack.c.b16 %v105, %v104
    %v111 = vpack.c.b16 %v106, %v106
    %vm116 = vcmask 556032
    %v118 = vsel %vm116, %v70, 0
    %vm120 = vcmask 1041408
    %v122 = vsel %vm120, %v111, 0
    %124 = vmatprep.subr.bf16.mxu0 0
    %125 = vmatpush1.bf16.msra.mxu0 %v107
    %126 = vmatprep.subr.bf16.mxu0 0
    %127 = vmatpush1.bf16.msra.mxu0 %v108
    %128 = vmatprep.subr.bf16.mxu0 0
    %129 = vmatpush1.bf16.msra.mxu0 %v109
    %130 = vmatprep.subr.bf16.mxu0 0
    %131 = vmatpush1.bf16.msra.mxu0 %v110
    %132 = vmatprep.subr.bf16.mxu0 0
    %133 = vmatpush1.bf16.msra.mxu0 %v122
    %134 = vmatprep.subr.bf16.mxu0 0
    %135 = vmatpush1.bf16.msra.mxu0 0
    %136 = vmatprep.subr.bf16.mxu0 0
    %137 = vmatpush1.bf16.msra.mxu0 0
    %138 = vmatprep.subr.bf16.mxu0 0
    %139 = vmatpush1.bf16.msra.mxu0 0
    %140 = vmatprep.subr.bf16.mxu0 0
    %141 = vmatpush1.bf16.msra.mxu0 0
    %142 = vmatprep.subr.bf16.mxu0 0
    %143 = vmatpush1.bf16.msra.mxu0 0
    %144 = vmatprep.subr.bf16.mxu0 0
    %145 = vmatpush1.bf16.msra.mxu0 0
    %146 = vmatprep.subr.bf16.mxu0 0
    %147 = vmatpush1.bf16.msra.mxu0 0
    %148 = vmatprep.subr.bf16.mxu0 0
    %149 = vmatpush1.bf16.msra.mxu0 0
    %150 = vmatprep.subr.bf16.mxu0 0
    %151 = vmatpush1.bf16.msra.mxu0 0
    %152 = vmatprep.subr.bf16.mxu0 0
    %153 = vmatpush1.bf16.msra.mxu0 0
    %154 = vmatprep.subr.bf16.mxu0 0
    %155 = vmatpush1.bf16.msra.mxu0 0
    %156 = vmatprep.mubr.bf16.mxu0 0
    %157 = vmatmul.mubr.bf16.gmra.mrb[0].mxu0 %v118
    %v158 = vpop.f32.mrb[0].mxu0
    %v159 = vadd.f32 0.0, %v158
    %v160 = vpop.f32.mrb[0].mxu0
    %v161 = vpop.f32.mrb[0].mxu0
    %v162 = vpop.f32.mrb[0].mxu0
    %163 = vdwg.mxu0
    %v173 = vunpack.c.l.b16 %v71
    %v174 = vunpack.c.l.b16 %v72
    %v175 = vunpack.c.l.b16 %v73
    %v176 = vunpack.c.l.b16 %v74
    %v177 = vunpack.c.l.b16 %v75
    %v178 = vunpack.c.l.b16 %v76
    %v179 = vunpack.c.l.b16 %v77
    %v180 = vunpack.c.l.b16 %v78
    %v181 = vunpack.c.l.b16 %v79
    %v182 = vpack.c.b16 %v174, %v173
    %v183 = vpack.c.b16 %v176, %v175
    %v184 = vpack.c.b16 %v178, %v177
    %v185 = vpack.c.b16 %v180, %v179
    %v186 = vpack.c.b16 %v181, %v181
    %v192 = vsel %vm120, %v186, 0
    %194 = vmatprep.subr.bf16.mxu0 0
    %195 = vmatpush1.bf16.msra.mxu0 %v182
    %196 = vmatprep.subr.bf16.mxu0 0
    %197 = vmatpush1.bf16.msra.mxu0 %v183
    %198 = vmatprep.subr.bf16.mxu0 0
    %199 = vmatpush1.bf16.msra.mxu0 %v184
    %200 = vmatprep.subr.bf16.mxu0 0
    %201 = vmatpush1.bf16.msra.mxu0 %v185
    %202 = vmatprep.subr.bf16.mxu0 0
    %203 = vmatpush1.bf16.msra.mxu0 %v192
    %204 = vmatprep.subr.bf16.mxu0 0
    %205 = vmatpush1.bf16.msra.mxu0 0
    %206 = vmatprep.subr.bf16.mxu0 0
    %207 = vmatpush1.bf16.msra.mxu0 0
    %208 = vmatprep.subr.bf16.mxu0 0
    %209 = vmatpush1.bf16.msra.mxu0 0
    %210 = vmatprep.subr.bf16.mxu0 0
    %211 = vmatpush1.bf16.msra.mxu0 0
    %212 = vmatprep.subr.bf16.mxu0 0
    %213 = vmatpush1.bf16.msra.mxu0 0
    %214 = vmatprep.subr.bf16.mxu0 0
    %215 = vmatpush1.bf16.msra.mxu0 0
    %216 = vmatprep.subr.bf16.mxu0 0
    %217 = vmatpush1.bf16.msra.mxu0 0
    %218 = vmatprep.subr.bf16.mxu0 0
    %219 = vmatpush1.bf16.msra.mxu0 0
    %220 = vmatprep.subr.bf16.mxu0 0
    %221 = vmatpush1.bf16.msra.mxu0 0
    %222 = vmatprep.subr.bf16.mxu0 0
    %223 = vmatpush1.bf16.msra.mxu0 0
    %224 = vmatprep.subr.bf16.mxu0 0
    %225 = vmatpush1.bf16.msra.mxu0 0
    %226 = vmatprep.mubr.bf16.mxu0 0
    %227 = vmatmul.mubr.bf16.gmra.mrb[0].mxu0 %v118
    %v228 = vpop.f32.mrb[0].mxu0
    %v229 = vadd.f32 %v159, %v228
    %v230 = vpop.f32.mrb[0].mxu0
    %v231 = vpop.f32.mrb[0].mxu0
    %v232 = vpop.f32.mrb[0].mxu0
    %233 = vdwg.mxu0
    %234 = vst [vmem:[%s3] sm:$0xff] %v229
    // Predicated region
    $region22: #{embedding_lookup_pallas.1} parent=1 // pred_check
      _
    $region23: #{embedding_lookup_pallas.1} parent=1 // pred_check_branch
      %236 = sbr.rel (0) target = $region25
    $region24: #{embedding_lookup_pallas.1} parent=1 // pred_region
      _
    $region25: #{embedding_lookup_pallas.1} parent=1 // pred_fallthru
      _
    // Predicated region
    $region26: #{embedding_lookup_pallas.1} parent=1 // pred_check
      _
    $region27: #{embedding_lookup_pallas.1} parent=1 // pred_check_branch
      %238 = sbr.rel (0) target = $region29
    $region28: #{embedding_lookup_pallas.1} parent=1 // pred_region
      _
    $region29: #{embedding_lookup_pallas.1} parent=1 // pred_fallthru
      _
    %239 = vsyncpa [#allocation3], 1
    %240 = vsyncpa [#allocation5], 1

</llo_original>
